<compile_context>
chip_gen: v6e
topology: v6e:2x2x1
jax: 0.10.0
libtpu: 0.0.40
codegen_flags: <defaults>
</compile_context>

<pallas_src>
import jax
import jax.numpy as jnp
from jax import lax
from jax.experimental import pallas as pl
from jax.experimental.pallas import tpu as pltpu


# ----------------------------------------------------------------------------
# Kernel
# ----------------------------------------------------------------------------
def _up_conv_kernel(x_ref, band_ref, shift_ref, o_ref):
    # x_ref:     (1, M+2, Wp*Cin)    stacked padded rows of NB images, bf16
    # band_ref:  (3, Wp*Cin, W*Cout) banded conv weights (BN scale folded), bf16
    # shift_ref: (1, W*Cout)         folded (bias - mean)*scale + beta, f32
    # o_ref:     (1, M, W*Cout)      lane-dense output slab, M = NB*Hp rows
    M = o_ref.shape[1]

    x = x_ref[0]                                          # (M+2, Wp*Cin)

    # 3 lane-dense MXU matmuls (one per kernel row dy).  LHS slices are
    # contiguous sublane-range slices of the stacked row buffer; if Mosaic
    # inserts a sublane shift for the odd bf16 offsets it lands on the
    # XLU/VPU slots and is cheap (verified-by-review assumption).
    acc = jnp.dot(x[0:M, :], band_ref[0], preferred_element_type=jnp.float32)
    acc = acc + jnp.dot(x[1:M + 1, :], band_ref[1],
                        preferred_element_type=jnp.float32)
    acc = acc + jnp.dot(x[2:M + 2, :], band_ref[2],
                        preferred_element_type=jnp.float32)

    # Fused bias/BN-shift + ReLU epilogue (scale already folded into band).
    o_ref[0] = jnp.maximum(acc + shift_ref[...], 0.0).astype(o_ref.dtype)


# ----------------------------------------------------------------------------
# One-time constant precompute (per weight update / at init for inference)
# ----------------------------------------------------------------------------
def make_up_conv_constants(weight_oihw, bias, gamma, beta, running_mean,
                           running_var, W, eps=1e-5,
                           compute_dtype=jnp.bfloat16):
    """Build banded ("weight-side im2col") matrices with BN scale folded in,
    plus the lane-dense folded shift vector.  Call once, reuse per forward."""
    Cout, Cin = weight_oihw.shape[0], weight_oihw.shape[1]
    Wp = W + 2

    bn_scale = gamma.astype(jnp.float32) / jnp.sqrt(
        running_var.astype(jnp.float32) + eps)

    # Fold BN scale into the conv weights (conv is linear).
    w_eff = weight_oihw.astype(jnp.float32) * bn_scale[:, None, None, None]
    w_hwio = jnp.transpose(w_eff, (2, 3, 1, 0))                  # (3,3,Cin,Cout)

    # band[dy, xp*Cin + cin, x*Cout + cout] = w_eff[cout, cin, dy, xp - x]
    #   for 0 <= xp - x <= 2, else 0.
    xp_i = jnp.arange(Wp)[:, None, None]
    x_i = jnp.arange(W)[None, :, None]
    dx_i = jnp.arange(3)[None, None, :]
    sel = (xp_i == x_i + dx_i).astype(jnp.float32)               # (Wp, W, 3)
    band = jnp.einsum('pxd,edic->epixc', sel, w_hwio)            # (3,Wp,Cin,W,Cout)
    band = band.reshape(3, Wp * Cin, W * Cout).astype(compute_dtype)

    # Folded shift, pre-tiled to the lane-dense column layout col = x*Cout+cout.
    shift = ((bias.astype(jnp.float32) - running_mean.astype(jnp.float32))
             * bn_scale + beta.astype(jnp.float32))
    shift = jnp.tile(shift, W).reshape(1, W * Cout)
    return band, shift


# ----------------------------------------------------------------------------
# Forward
# ----------------------------------------------------------------------------
def up_conv_apply(x_nchw, band, shift, *, compute_dtype=jnp.bfloat16,
                  out_dtype=jnp.float32):
    """Forward pass matching nn.Sequential(Conv2d(3,1,1), BatchNorm2d, ReLU)
    (inference-mode BN), given precomputed (band, shift) constants."""
    N, Cin, H, W = x_nchw.shape
    Hp, Wp = H + 2, W + 2
    Cout = band.shape[2] // W
    assert band.shape == (3, Wp * Cin, W * Cout)

    # Block split: collapse the whole batch into one big-M matmul when the
    # batch is small (overhead-bound regime); split into 2 image-aligned
    # parallel blocks for larger batches so both v7x TensorCores get work.
    num_blocks = 2 if (N >= 4 and N % 2 == 0) else 1
    NB = N // num_blocks
    M = NB * Hp                       # output rows per block (incl. seam rows)

    # Input glue: NCHW -> padded NHWC rows, stacked per block, + 2 trailing
    # zero rows per block so every output row has its 3 input rows in-bounds.
    x_nhwc = jnp.transpose(x_nchw.astype(compute_dtype), (0, 2, 3, 1))
    x_pad = jnp.pad(x_nhwc, ((0, 0), (1, 1), (1, 1), (0, 0)))    # (N,Hp,Wp,Cin)
    x_rows = x_pad.reshape(num_blocks, M, Wp * Cin)
    x_rows = jnp.pad(x_rows, ((0, 0), (0, 2), (0, 0)))           # (nb,M+2,Wp*Cin)

    out = pl.pallas_call(
        _up_conv_kernel,
        out_shape=jax.ShapeDtypeStruct((num_blocks, M, W * Cout), out_dtype),
        grid_spec=pltpu.PrefetchScalarGridSpec(
            num_scalar_prefetch=0,
            grid=(num_blocks,),
            in_specs=[
                pl.BlockSpec((1, M + 2, Wp * Cin), lambda b: (b, 0, 0)),
                pl.BlockSpec((3, Wp * Cin, W * Cout), lambda b: (0, 0, 0)),
                pl.BlockSpec((1, W * Cout), lambda b: (0, 0)),
            ],
            out_specs=pl.BlockSpec((1, M, W * Cout), lambda b: (b, 0, 0)),
        ),
        compiler_params=pltpu.CompilerParams(
            dimension_semantics=("parallel",),
            vmem_limit_bytes=32 * 1024 * 1024),
    )(x_rows, band, shift)

    # Drop the 2 seam rows per image and restore NCHW; the slice fuses into
    # the (unavoidable for the NCHW contract) transpose.
    out = out.reshape(N, Hp, W, Cout)[:, :H]
    return jnp.transpose(out, (0, 3, 1, 2))                      # NHWC -> NCHW


# ----------------------------------------------------------------------------
# Pure-JAX references for correctness checking
# ----------------------------------------------------------------------------
def _reference(x_nchw, weight_oihw, bias, gamma, beta, mean, var, eps=1e-5):
    """Full-f32 reference matching the PyTorch module (inference-mode BN)."""
    x_nhwc = jnp.transpose(x_nchw, (0, 2, 3, 1))
    w_hwio = jnp.transpose(weight_oihw, (2, 3, 1, 0))
    y = lax.conv_general_dilated(
        x_nhwc, w_hwio, window_strides=(1, 1), padding="SAME",
        dimension_numbers=("NHWC", "HWIO", "NHWC"),
        precision=lax.Precision.HIGHEST)
    y = y + bias
    y = (y - mean) / jnp.sqrt(var + eps) * gamma + beta
    y = jnp.maximum(y, 0.0)
    return jnp.transpose(y, (0, 3, 1, 2))


def _reference_folded(x_nchw, w_eff_oihw, shift_vec):
    """Reference using the same folded effective weights as the kernel."""
    x_nhwc = jnp.transpose(x_nchw, (0, 2, 3, 1))
    w_hwio = jnp.transpose(w_eff_oihw, (2, 3, 1, 0))
    y = lax.conv_general_dilated(
        x_nhwc, w_hwio, window_strides=(1, 1), padding="SAME",
        dimension_numbers=("NHWC", "HWIO", "NHWC"),
        precision=lax.Precision.HIGHEST)
    y = jnp.maximum(y + shift_vec, 0.0)
    return jnp.transpose(y, (0, 3, 1, 2))


# ----------------------------------------------------------------------------
if __name__ == "__main__":
    key = jax.random.PRNGKey(0)
    k_x, k_w, k_b, k_g, k_be, k_x2 = jax.random.split(key, 6)

    N, in_ch, out_ch, H, W = 2, 4, 8, 16, 16
    eps = 1e-5

    x = jax.random.normal(k_x, (N, in_ch, H, W), dtype=jnp.float32)

    # Deterministic parameter init (shapes from up_conv.__init__).
    weight = jax.random.normal(k_w, (out_ch, in_ch, 3, 3), dtype=jnp.float32) * 0.1
    bias = jax.random.normal(k_b, (out_ch,), dtype=jnp.float32) * 0.1
    gamma = 1.0 + 0.1 * jax.random.normal(k_g, (out_ch,), dtype=jnp.float32)
    beta = 0.1 * jax.random.normal(k_be, (out_ch,), dtype=jnp.float32)
    running_mean = jnp.zeros((out_ch,), jnp.float32)   # PyTorch BN init
    running_var = jnp.ones((out_ch,), jnp.float32)     # PyTorch BN init

    # One-time constant precompute (hoisted out of the per-call forward).
    band, shift = make_up_conv_constants(
        weight, bias, gamma, beta, running_mean, running_var, W, eps=eps)
    band, shift = jax.block_until_ready((band, shift))

    apply_fn = jax.jit(up_conv_apply)

    out = apply_fn(x, band, shift)
    out = jax.block_until_ready(out)
    assert out.shape == (N, out_ch, H, W)

    # Tight check: reference built from the SAME folded + bf16-quantized
    # effective weights and bf16-quantized activations the kernel uses ->
    # isolates kernel logic from input quantization.
    bn_scale = gamma / jnp.sqrt(running_var + eps)
    w_eff_q = ((weight * bn_scale[:, None, None, None])
               .astype(jnp.bfloat16).astype(jnp.float32))
    shift_vec = (bias - running_mean) * bn_scale + beta
    xq = x.astype(jnp.bfloat16).astype(jnp.float32)
    ref_tight = _reference_folded(xq, w_eff_q, shift_vec)
    assert jnp.allclose(out, ref_tight, atol=1e-4, rtol=1e-4), \
        "mismatch vs bf16-quantized folded reference"

    # Loose check vs the full-f32 PyTorch-semantics reference: the only
    # deviation is bf16 input/weight quantization (accumulation and the
    # shift/ReLU epilogue are f32 in-kernel).
    ref = _reference(x, weight, bias, gamma, beta, running_mean, running_var,
                     eps=eps)
    assert jnp.allclose(out, ref, atol=2e-2, rtol=2e-2), \
        "mismatch vs f32 reference"

    # Also exercise the 2-block "parallel" path (used for N >= 4, keeps both
    # v7x TensorCores busy) with the same precomputed constants.
    x4 = jax.random.normal(k_x2, (4, in_ch, H, W), dtype=jnp.float32)
    out4 = jax.block_until_ready(apply_fn(x4, band, shift))
    ref4 = _reference(x4, weight, bias, gamma, beta, running_mean, running_var,
                      eps=eps)
    assert out4.shape == (4, out_ch, H, W)
    assert jnp.allclose(out4, ref4, atol=2e-2, rtol=2e-2), \
        "mismatch vs f32 reference (2-block path)"

    print("KERNEL_OK")
</pallas_src>

<mosaic_0001>
module attributes {stable_mosaic.version = 11 : i64} {
  func.func @_up_conv_kernel(%arg0: i32, %arg1: memref<1x38x72xbf16, #tpu.memory_space<vmem>>, %arg2: memref<3x72x128xbf16, #tpu.memory_space<vmem>>, %arg3: memref<1x128xf32, #tpu.memory_space<vmem>>, %arg4: memref<1x36x128xf32, #tpu.memory_space<vmem>>) attributes {dimension_semantics = [#tpu.dimension_semantics<parallel>], iteration_bounds = array<i64: 1>, scalar_prefetch = 0 : i64, scratch_operands = 0 : i64, tpu.core_type = #tpu.core_type<tc>, window_params = [{transform_indices = @transform_0, window_bounds = array<i64: 1, 38, 72>}, {pipeline_mode = #tpu.pipeline_mode<synchronous>, transform_indices = @transform_1, window_bounds = array<i64: 3, 72, 128>}, {pipeline_mode = #tpu.pipeline_mode<synchronous>, transform_indices = @transform_2, window_bounds = array<i64: 1, 128>}, {transform_indices = @transform_3, window_bounds = array<i64: 1, 36, 128>}]} {
    %c0 = arith.constant 0 : index
    %c0_0 = arith.constant 0 : index
    %c0_1 = arith.constant 0 : index
    %0 = vector.load %arg1[%c0, %c0_0, %c0_1] : memref<1x38x72xbf16, #tpu.memory_space<vmem>>, vector<1x38x72xbf16>
    %1 = vector.shape_cast %0 : vector<1x38x72xbf16> to vector<38x72xbf16>
    %2 = vector.extract_strided_slice %1 {offsets = [0, 0], sizes = [36, 72], strides = [1, 1]} : vector<38x72xbf16> to vector<36x72xbf16>
    %c0_2 = arith.constant 0 : index
    %c0_3 = arith.constant 0 : index
    %c0_4 = arith.constant 0 : index
    %3 = vector.load %arg2[%c0_2, %c0_3, %c0_4] : memref<3x72x128xbf16, #tpu.memory_space<vmem>>, vector<1x72x128xbf16>
    %4 = vector.shape_cast %3 : vector<1x72x128xbf16> to vector<72x128xbf16>
    %cst = arith.constant dense<0.000000e+00> : vector<36x128xf32>
    %5 = tpu.matmul %2, %4, %cst {dimension_numbers = #tpu.dot_dimension_numbers<[1], [0], [0], [1], [0, 0, 1, 1], [], []>} : vector<36x72xbf16>, vector<72x128xbf16>, vector<36x128xf32> -> vector<36x128xf32>
    %6 = vector.extract_strided_slice %1 {offsets = [1, 0], sizes = [36, 72], strides = [1, 1]} : vector<38x72xbf16> to vector<36x72xbf16>
    %c1 = arith.constant 1 : index
    %c0_5 = arith.constant 0 : index
    %c0_6 = arith.constant 0 : index
    %7 = vector.load %arg2[%c1, %c0_5, %c0_6] : memref<3x72x128xbf16, #tpu.memory_space<vmem>>, vector<1x72x128xbf16>
    %8 = vector.shape_cast %7 : vector<1x72x128xbf16> to vector<72x128xbf16>
    %cst_7 = arith.constant dense<0.000000e+00> : vector<36x128xf32>
    %9 = tpu.matmul %6, %8, %cst_7 {dimension_numbers = #tpu.dot_dimension_numbers<[1], [0], [0], [1], [0, 0, 1, 1], [], []>} : vector<36x72xbf16>, vector<72x128xbf16>, vector<36x128xf32> -> vector<36x128xf32>
    %10 = arith.addf %5, %9 : vector<36x128xf32>
    %11 = vector.extract_strided_slice %1 {offsets = [2, 0], sizes = [36, 72], strides = [1, 1]} : vector<38x72xbf16> to vector<36x72xbf16>
    %c2 = arith.constant 2 : index
    %c0_8 = arith.constant 0 : index
    %c0_9 = arith.constant 0 : index
    %12 = vector.load %arg2[%c2, %c0_8, %c0_9] : memref<3x72x128xbf16, #tpu.memory_space<vmem>>, vector<1x72x128xbf16>
    %13 = vector.shape_cast %12 : vector<1x72x128xbf16> to vector<72x128xbf16>
    %cst_10 = arith.constant dense<0.000000e+00> : vector<36x128xf32>
    %14 = tpu.matmul %11, %13, %cst_10 {dimension_numbers = #tpu.dot_dimension_numbers<[1], [0], [0], [1], [0, 0, 1, 1], [], []>} : vector<36x72xbf16>, vector<72x128xbf16>, vector<36x128xf32> -> vector<36x128xf32>
    %15 = arith.addf %10, %14 : vector<36x128xf32>
    %c0_11 = arith.constant 0 : index
    %c0_12 = arith.constant 0 : index
    %16 = vector.load %arg3[%c0_11, %c0_12] : memref<1x128xf32, #tpu.memory_space<vmem>>, vector<1x128xf32>
    %17 = vector.broadcast %16 : vector<1x128xf32> to vector<36x128xf32>
    %18 = arith.addf %15, %17 : vector<36x128xf32>
    %cst_13 = arith.constant 0.000000e+00 : f32
    %19 = vector.broadcast %cst_13 : f32 to vector<36x128xf32>
    %20 = arith.maximumf %18, %19 : vector<36x128xf32>
    %c0_14 = arith.constant 0 : index
    %c0_15 = arith.constant 0 : index
    %c0_16 = arith.constant 0 : index
    %21 = vector.load %arg4[%c0_14, %c0_15, %c0_16] : memref<1x36x128xf32, #tpu.memory_space<vmem>>, vector<1x36x128xf32>
    %22 = vector.shape_cast %21 : vector<1x36x128xf32> to vector<36x128xf32>
    %23 = vector.shape_cast %20 : vector<36x128xf32> to vector<1x36x128xf32>
    tpu.vector_store %arg4[%c0_14, %c0_15, %c0_16], %23 {strides = array<i32>} : memref<1x36x128xf32, #tpu.memory_space<vmem>>, vector<1x36x128xf32>,
    return
  }
  func.func @transform_0(%arg0: i32) -> (i32, i32, i32) {
    %c0_i32 = arith.constant 0 : i32
    %c0_i32_0 = arith.constant 0 : i32
    %c0_i32_1 = arith.constant 0 : i32
    return %arg0, %c0_i32, %c0_i32_0 : i32, i32, i32
  }
  func.func @transform_1(%arg0: i32) -> (i32, i32, i32) {
    %c0_i32 = arith.constant 0 : i32
    %c0_i32_0 = arith.constant 0 : i32
    %c0_i32_1 = arith.constant 0 : i32
    %c0_i32_2 = arith.constant 0 : i32
    return %c0_i32, %c0_i32_0, %c0_i32_1 : i32, i32, i32
  }
  func.func @transform_2(%arg0: i32) -> (i32, i32) {
    %c0_i32 = arith.constant 0 : i32
    %c0_i32_0 = arith.constant 0 : i32
    %c0_i32_1 = arith.constant 0 : i32
    return %c0_i32, %c0_i32_0 : i32, i32
  }
  func.func @transform_3(%arg0: i32) -> (i32, i32, i32) {
    %c0_i32 = arith.constant 0 : i32
    %c0_i32_0 = arith.constant 0 : i32
    %c0_i32_1 = arith.constant 0 : i32
    return %arg0, %c0_i32, %c0_i32_0 : i32, i32, i32
  }
}

</mosaic_0001>

<llo_original>
// kernel: up_conv_apply.1
$region0: #{up_conv_apply.1}
  #allocation0 [shape = 'u32[]', space=smem, size = 0x4, offset = 0x4, fixed_abs, tag = 'smem constant byte address 0x4 - core index']
  #allocation1 [shape = 'u32[144,128]{1,0:T(1,128)}', space=vmem, size = 0x12000, scoped, tag = 'internal scratch']
  %s0 = inlined_call_operand.vmem [shape: bf16[1,38,72], index: 0, kind: input, shape index: {}]
  %s1 = inlined_call_operand.vmem [shape: bf16[3,72,128], index: 1, kind: input, shape index: {}]
  %s2 = inlined_call_operand.vmem [shape: f32[1,128], index: 2, kind: input, shape index: {}]
  %s3 = inlined_call_operand.vmem [shape: f32[1,36,128], index: 3, kind: output, shape index: {}]
  %s4 = sld [smem:[#allocation0]]
  $region22: #{up_conv_apply.1} parent=0
    _
  %s6 = ssub.s32 1, %s4
  %s7 = scalar_select 0, %s6, %s4
  // Predicated region
  $region2: #{up_conv_apply.1} parent=0 // pred_check
    _
  $region3: #{up_conv_apply.1} parent=0 // pred_check_branch
    %9 = sbr.rel (0) target = $region5
  $region4: #{up_conv_apply.1} parent=0 // pred_region
    _
  $region5: #{up_conv_apply.1} parent=0 // pred_fallthru
    _
  // Predicated region
  $region6: #{up_conv_apply.1} parent=0 // pred_check
    _
  $region7: #{up_conv_apply.1} parent=0 // pred_check_branch
    %11 = sbr.rel (0) target = $region9
  $region8: #{up_conv_apply.1} parent=0 // pred_region
    _
  $region9: #{up_conv_apply.1} parent=0 // pred_fallthru
    _
  // Predicated region
  $region10: #{up_conv_apply.1} parent=0 // pred_check
    _
  $region11: #{up_conv_apply.1} parent=0 // pred_check_branch
    %13 = sbr.rel (0) target = $region13
  $region12: #{up_conv_apply.1} parent=0 // pred_region
    _
  $region13: #{up_conv_apply.1} parent=0 // pred_fallthru
    _
  %v15 = vld [vmem:[%s0] sm:$0xf]
  %v16 = vld [vmem:[%s0 + $0x4] sm:$0xf]
  %v17 = vld [vmem:[%s0 + $0x8] sm:$0xf]
  %v18 = vld [vmem:[%s0 + $0xc] sm:$0xf]
  %v19 = vld [vmem:[%s0 + $0x10] sm:$0x7]
  %v20 = vld [vmem:[%s1] sm:$0xf]
  %v21 = vld [vmem:[%s1 + $0x4] sm:$0xf]
  %v22 = vld [vmem:[%s1 + $0x8] sm:$0xf]
  %v23 = vld [vmem:[%s1 + $0xc] sm:$0xf]
  %v24 = vld [vmem:[%s1 + $0x10] sm:$0xf]
  %v25 = vld [vmem:[%s1 + $0x14] sm:$0xf]
  %v26 = vld [vmem:[%s1 + $0x18] sm:$0xf]
  %v27 = vld [vmem:[%s1 + $0x1c] sm:$0xf]
  %v28 = vld [vmem:[%s1 + $0x20] sm:$0xf]
  %s29 = scalar_lea.vmem %s1, 36
  %v30 = vld [vmem:[%s29] sm:$0xf]
  %v31 = vld [vmem:[%s29 + $0x4] sm:$0xf]
  %v32 = vld [vmem:[%s29 + $0x8] sm:$0xf]
  %v33 = vld [vmem:[%s29 + $0xc] sm:$0xf]
  %v34 = vld [vmem:[%s29 + $0x10] sm:$0xf]
  %v35 = vld [vmem:[%s29 + $0x14] sm:$0xf]
  %v36 = vld [vmem:[%s29 + $0x18] sm:$0xf]
  %v37 = vld [vmem:[%s29 + $0x1c] sm:$0xf]
  %v38 = vld [vmem:[%s29 + $0x20] sm:$0xf]
  %v44 = vunpack.c.l.b16 %v15
  %v45 = vunpack.c.l.b16 %v16
  %v46 = vunpack.c.l.b16 %v17
  %v47 = vunpack.c.l.b16 %v18
  %v48 = vunpack.c.l.b16 %v19
  %v49 = vpack.c.b16 %v45, %v44
  %v50 = vpack.c.b16 %v47, %v46
  %v51 = vpack.c.b16 %v48, %v48
  %vm52 = vsmask.f32 7424
  %v54 = vshrl.u32 %v49, 16
  %v56 = vshll.u32 %v49, 16
  %v58 = vrot.slane %v56, 1
  %v59 = vor.u32 %v54, %v58
  %v61 = vshll.u32 %v50, 16
  %v63 = vrot.slane %v61, 1
  %v64 = vsel %vm52, %v59, %v63
  %v65 = vshrl.u32 %v50, 16
  %v67 = vor.u32 %v65, %v63
  %v69 = vshll.u32 %v51, 16
  %v71 = vrot.slane %v69, 1
  %v72 = vsel %vm52, %v67, %v71
  %v73 = vshrl.u32 %v51, 16
  %v75 = vor.u32 %v73, %v71
  %v85 = vunpack.c.l.b16 %v30
  %v86 = vunpack.c.l.b16 %v31
  %v87 = vunpack.c.l.b16 %v32
  %v88 = vunpack.c.l.b16 %v33
  %v89 = vunpack.c.l.b16 %v34
  %v90 = vunpack.c.l.b16 %v35
  %v91 = vunpack.c.l.b16 %v36
  %v92 = vunpack.c.l.b16 %v37
  %v93 = vunpack.c.l.b16 %v38
  %v94 = vpack.c.b16 %v86, %v85
  %v95 = vpack.c.b16 %v88, %v87
  %v96 = vpack.c.b16 %v90, %v89
  %v97 = vpack.c.b16 %v92, %v91
  %v98 = vpack.c.b16 %v93, %v93
  %vm103 = vcmask 588800
  %v105 = vsel %vm103, %v64, 0
  %v108 = vsel %vm103, %v72, 0
  %v111 = vsel %vm103, %v75, 0
  %vm113 = vcmask 1043456
  %v115 = vsel %vm113, %v98, 0
  %117 = vmatprep.subr.bf16.mxu0 0
  %118 = vmatpush1.bf16.msra.mxu0 0
  %119 = vmatprep.subr.bf16.mxu0 0
  %120 = vmatpush1.bf16.msra.mxu0 0
  %121 = vmatprep.subr.bf16.mxu0 0
  %122 = vmatpush1.bf16.msra.mxu0 0
  %123 = vmatprep.subr.bf16.mxu0 0
  %124 = vmatpush1.bf16.msra.mxu0 %v115
  %125 = vmatprep.subr.bf16.mxu0 0
  %126 = vmatpush1.bf16.msra.mxu0 %v97
  %127 = vmatprep.subr.bf16.mxu0 0
  %128 = vmatpush1.bf16.msra.mxu0 %v96
  %129 = vmatprep.subr.bf16.mxu0 0
  %130 = vmatpush1.bf16.msra.mxu0 %v95
  %131 = vmatprep.subr.bf16.mxu0 0
  %132 = vmatpush1.bf16.msra.mxu0 %v94
  %133 = vmatprep.subr.bf16.mxu0 0
  %134 = vmatpush2.bf16.msra.mxu0 0
  %135 = vmatprep.subr.bf16.mxu0 0
  %136 = vmatpush2.bf16.msra.mxu0 0
  %137 = vmatprep.subr.bf16.mxu0 0
  %138 = vmatpush2.bf16.msra.mxu0 0
  %139 = vmatprep.subr.bf16.mxu0 0
  %140 = vmatpush2.bf16.msra.mxu0 0
  %141 = vmatprep.subr.bf16.mxu0 0
  %142 = vmatpush2.bf16.msra.mxu0 0
  %143 = vmatprep.subr.bf16.mxu0 0
  %144 = vmatpush2.bf16.msra.mxu0 0
  %145 = vmatprep.subr.bf16.mxu0 0
  %146 = vmatpush2.bf16.msra.mxu0 0
  %147 = vmatprep.subr.bf16.mxu0 0
  %148 = vmatpush2.bf16.msra.mxu0 0
  %149 = vmatprep.mubr.bf16.mxu0 0
  %150 = vmatmul.mubr.bf16.gmra.mxu0 %v105
  %v151 = vpop.f32.mrf.mxu0
  %v152 = vadd.f32 0.0, %v151
  %v153 = vpop.f32.mrf.mxu0
  %v154 = vpop.f32.mrf.mxu0
  %v155 = vadd.f32 0.0, %v154
  %v156 = vpop.f32.mrf.mxu0
  %157 = vmatprep.mubr.bf16.mxu0 0
  %158 = vmatmul.mubr.bf16.gmra.mxu0 %v108
  %v159 = vpop.f32.mrf.mxu0
  %v160 = vadd.f32 0.0, %v159
  %v161 = vpop.f32.mrf.mxu0
  %v162 = vpop.f32.mrf.mxu0
  %v163 = vadd.f32 0.0, %v162
  %v164 = vpop.f32.mrf.mxu0
  %165 = vmatprep.mubr.bf16.mxu0 0
  %166 = vmatmul.mubr.bf16.gmra.mxu0 %v111
  %v167 = vpop.f32.mrf.mxu0
  %v168 = vadd.f32 0.0, %v167
  %v169 = vpop.f32.mrf.mxu0
  %v170 = vpop.f32.mrf.mxu0
  %v171 = vpop.f32.mrf.mxu0
  %172 = vdwg.mxu0
  %v182 = vunpack.c.l.b16 %v20
  %v183 = vunpack.c.l.b16 %v21
  %v184 = vunpack.c.l.b16 %v22
  %v185 = vunpack.c.l.b16 %v23
  %v186 = vunpack.c.l.b16 %v24
  %v187 = vunpack.c.l.b16 %v25
  %v188 = vunpack.c.l.b16 %v26
  %v189 = vunpack.c.l.b16 %v27
  %v190 = vunpack.c.l.b16 %v28
  %v191 = vpack.c.b16 %v183, %v182
  %v192 = vpack.c.b16 %v185, %v184
  %v193 = vpack.c.b16 %v187, %v186
  %v194 = vpack.c.b16 %v189, %v188
  %v195 = vpack.c.b16 %v190, %v190
  %v200 = vsel %vm103, %v49, 0
  %v202 = vsel %vm103, %v50, 0
  %v204 = vsel %vm103, %v51, 0
  %v207 = vsel %vm113, %v195, 0
  %209 = vmatprep.subr.bf16.mxu0 0
  %210 = vmatpush1.bf16.msra.mxu0 0
  %211 = vmatprep.subr.bf16.mxu0 0
  %212 = vmatpush1.bf16.msra.mxu0 0
  %213 = vmatprep.subr.bf16.mxu0 0
  %214 = vmatpush1.bf16.msra.mxu0 0
  %215 = vmatprep.subr.bf16.mxu0 0
  %216 = vmatpush1.bf16.msra.mxu0 %v207
  %217 = vmatprep.subr.bf16.mxu0 0
  %218 = vmatpush1.bf16.msra.mxu0 %v194
  %219 = vmatprep.subr.bf16.mxu0 0
  %220 = vmatpush1.bf16.msra.mxu0 %v193
  %221 = vmatprep.subr.bf16.mxu0 0
  %222 = vmatpush1.bf16.msra.mxu0 %v192
  %223 = vmatprep.subr.bf16.mxu0 0
  %224 = vmatpush1.bf16.msra.mxu0 %v191
  %225 = vmatprep.subr.bf16.mxu0 0
  %226 = vmatpush2.bf16.msra.mxu0 0
  %227 = vmatprep.subr.bf16.mxu0 0
  %228 = vmatpush2.bf16.msra.mxu0 0
  %229 = vmatprep.subr.bf16.mxu0 0
  %230 = vmatpush2.bf16.msra.mxu0 0
  %231 = vmatprep.subr.bf16.mxu0 0
  %232 = vmatpush2.bf16.msra.mxu0 0
  %233 = vmatprep.subr.bf16.mxu0 0
  %234 = vmatpush2.bf16.msra.mxu0 0
  %235 = vmatprep.subr.bf16.mxu0 0
  %236 = vmatpush2.bf16.msra.mxu0 0
  %237 = vmatprep.subr.bf16.mxu0 0
  %238 = vmatpush2.bf16.msra.mxu0 0
  %239 = vmatprep.subr.bf16.mxu0 0
  %240 = vmatpush2.bf16.msra.mxu0 0
  %241 = vmatprep.mubr.bf16.mxu0 0
  %242 = vmatmul.mubr.bf16.gmra.mxu0 %v200
  %v243 = vpop.f32.mrf.mxu0
  %v244 = vadd.f32 %v152, %v243
  %v245 = vpop.f32.mrf.mxu0
  %v246 = vpop.f32.mrf.mxu0
  %v247 = vadd.f32 %v155, %v246
  %v248 = vpop.f32.mrf.mxu0
  %249 = vmatprep.mubr.bf16.mxu0 0
  %250 = vmatmul.mubr.bf16.gmra.mxu0 %v202
  %v251 = vpop.f32.mrf.mxu0
  %v252 = vadd.f32 %v160, %v251
  %v253 = vpop.f32.mrf.mxu0
  %v254 = vpop.f32.mrf.mxu0
  %v255 = vadd.f32 %v163, %v254
  %v256 = vpop.f32.mrf.mxu0
  %257 = vmatprep.mubr.bf16.mxu0 0
  %258 = vmatmul.mubr.bf16.gmra.mxu0 %v204
  %v259 = vpop.f32.mrf.mxu0
  %v260 = vadd.f32 %v168, %v259
  %v261 = vpop.f32.mrf.mxu0
  %v262 = vpop.f32.mrf.mxu0
  %v263 = vpop.f32.mrf.mxu0
  %264 = vdwg.mxu0
  %s265 = scalar_lea.vmem %s1, 72
  %v266 = vld [vmem:[%s265] sm:$0xf]
  %v267 = vld [vmem:[%s265 + $0x4] sm:$0xf]
  %v268 = vld [vmem:[%s265 + $0x8] sm:$0xf]
  %v269 = vld [vmem:[%s265 + $0xc] sm:$0xf]
  %v270 = vld [vmem:[%s265 + $0x10] sm:$0xf]
  %v271 = vld [vmem:[%s265 + $0x14] sm:$0xf]
  %v272 = vld [vmem:[%s265 + $0x18] sm:$0xf]
  %v273 = vld [vmem:[%s265 + $0x1c] sm:$0xf]
  %v274 = vld [vmem:[%s265 + $0x20] sm:$0xf]
  %vm275 = vcmask 1046528
  %v276 = vrot.slane %v49, 1
  %v277 = vrot.slane %v50, 1
  %v278 = vsel %vm275, %v276, %v277
  %v279 = vrot.slane %v51, 1
  %v280 = vsel %vm275, %v277, %v279
  %v290 = vunpack.c.l.b16 %v266
  %v291 = vunpack.c.l.b16 %v267
  %v292 = vunpack.c.l.b16 %v268
  %v293 = vunpack.c.l.b16 %v269
  %v294 = vunpack.c.l.b16 %v270
  %v295 = vunpack.c.l.b16 %v271
  %v296 = vunpack.c.l.b16 %v272
  %v297 = vunpack.c.l.b16 %v273
  %v298 = vunpack.c.l.b16 %v274
  %v299 = vpack.c.b16 %v291, %v290
  %v300 = vpack.c.b16 %v293, %v292
  %v301 = vpack.c.b16 %v295, %v294
  %v302 = vpack.c.b16 %v297, %v296
  %v303 = vpack.c.b16 %v298, %v298
  %v309 = vsel %vm103, %v278, 0
  %v312 = vsel %vm103, %v280, 0
  %v315 = vsel %vm103, %v279, 0
  %v318 = vsel %vm113, %v303, 0
  %320 = vmatprep.subr.bf16.mxu0 0
  %321 = vmatpush1.bf16.msra.mxu0 0
  %322 = vmatprep.subr.bf16.mxu0 0
  %323 = vmatpush1.bf16.msra.mxu0 0
  %324 = vmatprep.subr.bf16.mxu0 0
  %325 = vmatpush1.bf16.msra.mxu0 0
  %326 = vmatprep.subr.bf16.mxu0 0
  %327 = vmatpush1.bf16.msra.mxu0 %v318
  %328 = vmatprep.subr.bf16.mxu0 0
  %329 = vmatpush1.bf16.msra.mxu0 %v302
  %330 = vmatprep.subr.bf16.mxu0 0
  %331 = vmatpush1.bf16.msra.mxu0 %v301
  %332 = vmatprep.subr.bf16.mxu0 0
  %333 = vmatpush1.bf16.msra.mxu0 %v300
  %334 = vmatprep.subr.bf16.mxu0 0
  %335 = vmatpush1.bf16.msra.mxu0 %v299
  %336 = vmatprep.subr.bf16.mxu0 0
  %337 = vmatpush2.bf16.msra.mxu0 0
  %338 = vmatprep.subr.bf16.mxu0 0
  %339 = vmatpush2.bf16.msra.mxu0 0
  %340 = vmatprep.subr.bf16.mxu0 0
  %341 = vmatpush2.bf16.msra.mxu0 0
  %342 = vmatprep.subr.bf16.mxu0 0
  %343 = vmatpush2.bf16.msra.mxu0 0
  %344 = vmatprep.subr.bf16.mxu0 0
  %345 = vmatpush2.bf16.msra.mxu0 0
  %346 = vmatprep.subr.bf16.mxu0 0
  %347 = vmatpush2.bf16.msra.mxu0 0
  %348 = vmatprep.subr.bf16.mxu0 0
  %349 = vmatpush2.bf16.msra.mxu0 0
  %350 = vmatprep.subr.bf16.mxu0 0
  %351 = vmatpush2.bf16.msra.mxu0 0
  %352 = vmatprep.mubr.bf16.mxu0 0
  %353 = vmatmul.mubr.bf16.gmra.mxu0 %v309
  %v354 = vpop.f32.mrf.mxu0
  %v355 = vadd.f32 0.0, %v354
  %v356 = vpop.f32.mrf.mxu0
  %v357 = vpop.f32.mrf.mxu0
  %v358 = vadd.f32 0.0, %v357
  %v359 = vpop.f32.mrf.mxu0
  %360 = vmatprep.mubr.bf16.mxu0 0
  %361 = vmatmul.mubr.bf16.gmra.mxu0 %v312
  %v362 = vpop.f32.mrf.mxu0
  %v363 = vadd.f32 0.0, %v362
  %v364 = vpop.f32.mrf.mxu0
  %v365 = vpop.f32.mrf.mxu0
  %v366 = vadd.f32 0.0, %v365
  %v367 = vpop.f32.mrf.mxu0
  %368 = vmatprep.mubr.bf16.mxu0 0
  %369 = vmatmul.mubr.bf16.gmra.mxu0 %v315
  %v370 = vpop.f32.mrf.mxu0
  %v371 = vadd.f32 0.0, %v370
  %v372 = vpop.f32.mrf.mxu0
  %v373 = vpop.f32.mrf.mxu0
  %v374 = vpop.f32.mrf.mxu0
  %375 = vdwg.mxu0
  %v376 = vadd.f32 %v244, %v355
  %v377 = vadd.f32 %v247, %v358
  %v378 = vadd.f32 %v252, %v363
  %v379 = vadd.f32 %v255, %v366
  %v380 = vadd.f32 %v260, %v371
  %v381 = vld [vmem:[%s2] sm:$0x1]
  %v383 = vlaneseq
  %v384 = vshrl.u32 %v383, 7
  %v385 = vsub.s32 0, %v384
  %v386 = vrot.slane %v381, %v385
  %v388 = vadd.f32 %v376, %v386
  %v389 = vadd.f32 %v377, %v386
  %v390 = vadd.f32 %v378, %v386
  %v391 = vadd.f32 %v379, %v386
  %v392 = vadd.f32 %v380, %v386
  %v393 = vmax.f32 %v388, 0.0
  %v394 = vmax.f32 %v389, 0.0
  %v395 = vmax.f32 %v390, 0.0
  %v396 = vmax.f32 %v391, 0.0
  %v397 = vmax.f32 %v392, 0.0
  %398 = vst [vmem:[%s3] sm:$0xff] %v393
  %399 = vst [vmem:[%s3 + $0x8] sm:$0xff] %v394
  %400 = vst [vmem:[%s3 + $0x10] sm:$0xff] %v395
  %401 = vst [vmem:[%s3 + $0x18] sm:$0xff] %v396
  %402 = vst [vmem:[%s3 + $0x20] sm:$0xf] %v397
  // Predicated region
  $region14: #{up_conv_apply.1} parent=0 // pred_check
    _
  $region15: #{up_conv_apply.1} parent=0 // pred_check_branch
    %404 = sbr.rel (0) target = $region17
  $region16: #{up_conv_apply.1} parent=0 // pred_region
    _
  $region17: #{up_conv_apply.1} parent=0 // pred_fallthru
    _
  // Predicated region
  $region18: #{up_conv_apply.1} parent=0 // pred_check
    _
  $region19: #{up_conv_apply.1} parent=0 // pred_check_branch
    %406 = sbr.rel (0) target = $region21
  $region20: #{up_conv_apply.1} parent=0 // pred_region
    _
  $region21: #{up_conv_apply.1} parent=0 // pred_fallthru
    _

</llo_original>
